<compile_context>
chip_gen: v5e
topology: v5e:2x2
jax: 0.10.0
libtpu: 0.0.40
codegen_flags: <defaults>
</compile_context>

<pallas_src>
import jax
import jax.numpy as jnp
import numpy as np
from jax.experimental import pallas as pl
from jax.experimental.pallas import tpu as pltpu


def _round_up(x, m):
    return (x + m - 1) // m * m


# ----------------------------- Pallas kernel ------------------------------ #
def _proj_kernel(x_ref, w_ref, b_ref, o_ref):
    # x_ref: (tm, K) compute dtype; w_ref: (K, tn) compute dtype
    # b_ref: (1, tn) f32;           o_ref: (tm, tn) out dtype (bf16 default)
    acc = jnp.dot(x_ref[...], w_ref[...], preferred_element_type=jnp.float32)
    o_ref[...] = (acc + b_ref[...]).astype(o_ref.dtype)


def _choose_tiles(M, K, Ep, in_isz, out_isz, *, vmem_cap_bytes,
                  target_step_bytes=2 << 20, min_m_steps=8):
    """Pick (tm, tn): >= ~2 MiB HBM traffic per step, several M steps for
    megacore/pipelining, and a double-buffered footprint under the cap."""
    bytes_per_row = K * in_isz + Ep * out_isz
    tm = max(512, _round_up(pl.cdiv(target_step_bytes, bytes_per_row), 128))
    # Keep >= min_m_steps row blocks when M is large enough (v7x has 2 TCs).
    tm = min(tm, max(128, _round_up(pl.cdiv(M, min_m_steps), 128)))
    tm = min(tm, _round_up(M, 8))        # never exceed the (8-padded) row count
    tn = Ep

    def need(tm_, tn_):
        return (2 * tm_ * K * in_isz       # patches stream, double-buffered
                + 2 * K * tn_ * in_isz     # weight (budgeted x2 for headroom)
                + 2 * tm_ * tn_ * out_isz  # output stream, double-buffered
                + 2 * tn_ * 4)             # bias (f32)

    # Shrink tm first (keeps full-width lane-dense output blocks), then split
    # E, then tm again as a last resort -- fit for real, don't just cap limit.
    while need(tm, tn) > vmem_cap_bytes and tm > 512:
        tm -= 128
    while need(tm, tn) > vmem_cap_bytes and tn > 128:
        tn -= 128
    while need(tm, tn) > vmem_cap_bytes and tm > 128:
        tm -= 128
    while Ep % tn:                         # keep E blocks an exact divisor
        tn -= 128
    return tm, tn, need(tm, tn)


def _patch_proj_matmul(patches, w_flat, bias, *, compute_dtype=jnp.bfloat16,
                       out_dtype=None):
    """patches: (M, K), w_flat: (K, E), bias: (E,) -> (M, E) in out_dtype."""
    M, K = patches.shape
    Kw, E = w_flat.shape
    assert K == Kw
    if out_dtype is None:
        out_dtype = compute_dtype          # bf16 out halves the output stream
    in_isz = jnp.dtype(compute_dtype).itemsize
    out_isz = jnp.dtype(out_dtype).itemsize

    # Lane-dense stores / full MXU columns: pad E up to a 128 multiple
    # (weight/bias only -- tiny, constant-size work).
    Ep = _round_up(E, 128)

    VMEM_CAP = 48 << 20   # leaves headroom under v7x's 64 MiB physical VMEM
    tm, tn, vmem_need = _choose_tiles(M, K, Ep, in_isz, out_isz,
                                      vmem_cap_bytes=VMEM_CAP)

    patches = patches.astype(compute_dtype)
    w_flat = w_flat.astype(compute_dtype)
    if Ep != E:
        w_flat = jnp.pad(w_flat, ((0, 0), (0, Ep - E)))
        bias = jnp.pad(bias, (0, Ep - E))
    bias2d = bias.astype(jnp.float32).reshape(1, Ep)

    grid = (pl.cdiv(M, tm), Ep // tn)      # ragged M edge handled by Pallas
    vmem_limit = int(max(32 << 20, min(VMEM_CAP, int(1.25 * vmem_need))))

    cost = pl.CostEstimate(
        flops=2 * M * K * Ep,
        bytes_accessed=(M * K * in_isz + K * Ep * in_isz + Ep * 4
                        + M * Ep * out_isz),
        transcendentals=0)

    # TODO(synk): fold the patch gather itself into this pallas_call (grid over
    # (B, T'), x BlockSpec (1, C, pt, Hp, Wp), rearrange in VMEM) once Mosaic's
    # general N-D transpose lowering is reliable; allow_input_fusion below is
    # the low-risk half-step that lets XLA fuse the producer chain.
    out = pl.pallas_call(
        _proj_kernel,
        out_shape=jax.ShapeDtypeStruct((M, Ep), out_dtype),
        grid_spec=pltpu.PrefetchScalarGridSpec(
            num_scalar_prefetch=0,
            grid=grid,
            in_specs=[
                pl.BlockSpec((tm, K), lambda i, j: (i, 0)),
                pl.BlockSpec((K, tn), lambda i, j: (0, j)),
                pl.BlockSpec((1, tn), lambda i, j: (0, j)),
            ],
            out_specs=pl.BlockSpec((tm, tn), lambda i, j: (i, j)),
        ),
        compiler_params=pltpu.CompilerParams(
            dimension_semantics=("parallel", "parallel"),
            vmem_limit_bytes=vmem_limit,
            allow_input_fusion=[True, False, False],
        ),
        cost_estimate=cost,
    )(patches, w_flat, bias2d)

    if Ep != E:
        out = out[:, :E]
    return out


# ------------------------------ Module glue ------------------------------- #
def patch_embed_3d_forward(x, weight, bias, patch_size, *,
                           compute_dtype=jnp.bfloat16, out_dtype=None):
    """Exact semantics of PatchEmbed3d.forward (norm = Identity).

    x:      (B, C, T, H, W)      (NCDHW, like PyTorch)
    weight: (E, C, pt, ph, pw)   (nn.Conv3d weight layout)
    bias:   (E,)
    returns (B, T', H', W', E)   ('b c t h w -> b t h w c')
    """
    B, C, T, H, W = x.shape
    pt, ph, pw = patch_size
    E = weight.shape[0]

    # F.pad(x, (0, pad_w, 0, pad_h, 0, pad_t)) -> zero-pad at end of T/H/W.
    pad_t = (pt - T % pt) % pt
    pad_h = (ph - H % ph) % ph
    pad_w = (pw - W % pw) % pw
    x = jnp.pad(x, ((0, 0), (0, 0), (0, pad_t), (0, pad_h), (0, pad_w)))
    Tp, Hp, Wp = T + pad_t, H + pad_h, W + pad_w
    To, Ho, Wo = Tp // pt, Hp // ph, Wp // pw

    # Patch gather: cast first so the single permutation pass moves half the
    # bytes; flatten in (C, dt, dh, dw) order to match Conv3d's contraction.
    xp = x.astype(compute_dtype)
    xp = xp.reshape(B, C, To, pt, Ho, ph, Wo, pw)
    xp = xp.transpose(0, 2, 4, 6, 1, 3, 5, 7)           # (B,T',H',W',C,pt,ph,pw)
    patches = xp.reshape(B * To * Ho * Wo, C * pt * ph * pw)

    w_flat = weight.reshape(E, C * pt * ph * pw).T       # (K, E)

    out = _patch_proj_matmul(patches, w_flat, bias,
                             compute_dtype=compute_dtype,
                             out_dtype=out_dtype)         # (M, E)
    return out.reshape(B, To, Ho, Wo, E)


# --------------------------------- Main ----------------------------------- #
if __name__ == "__main__":
    # Small but representative: T/H/W not divisible by the patch size (pad
    # path), E=32 (lane-padding path), and M=160 -> ragged edge-block path.
    B, C = 2, 4
    T, H, W = 7, 18, 14
    patch_size = (2, 4, 4)
    embed_dim = 32

    key = jax.random.PRNGKey(0)
    kx, kw, kb = jax.random.split(key, 3)
    x = jax.random.normal(kx, (B, C, T, H, W), dtype=jnp.float32)
    weight = jax.random.normal(kw, (embed_dim, C, *patch_size),
                               dtype=jnp.float32) * 0.05
    bias = jax.random.normal(kb, (embed_dim,), dtype=jnp.float32) * 0.05

    pt, ph, pw = patch_size
    To = (T + (pt - T % pt) % pt) // pt
    Ho = (H + (ph - H % ph) % ph) // ph
    Wo = (W + (pw - W % pw) % pw) // pw

    def ref_forward(cast_bf16):
        pad = ((0, 0), (0, 0),
               (0, (pt - T % pt) % pt),
               (0, (ph - H % ph) % ph),
               (0, (pw - W % pw) % pw))
        xr = jnp.pad(x, pad)
        xr = xr.reshape(B, C, To, pt, Ho, ph, Wo, pw)
        xr = xr.transpose(0, 2, 4, 6, 1, 3, 5, 7)
        xr = xr.reshape(B * To * Ho * Wo, C * pt * ph * pw)
        wr = weight.reshape(embed_dim, -1).T
        if cast_bf16:  # match the bf16-input rounding of the fast path
            xr = xr.astype(jnp.bfloat16).astype(jnp.float32)
            wr = wr.astype(jnp.bfloat16).astype(jnp.float32)
        return (xr @ wr + bias).reshape(B, To, Ho, Wo, embed_dim)

    # 1) Default fast path: bf16 inputs + bf16 output, f32 MXU accumulation.
    out_fast = jax.block_until_ready(
        patch_embed_3d_forward(x, weight, bias, patch_size))
    assert out_fast.shape == (B, To, Ho, Wo, embed_dim), out_fast.shape
    assert out_fast.dtype == jnp.bfloat16, out_fast.dtype
    np.testing.assert_allclose(
        np.asarray(out_fast.astype(jnp.float32)),
        np.asarray(ref_forward(cast_bf16=True)),
        rtol=2e-2, atol=2e-2)

    # 2) Exact f32 path (bit-for-bit module semantics).
    out_f32 = jax.block_until_ready(
        patch_embed_3d_forward(x, weight, bias, patch_size,
                               compute_dtype=jnp.float32,
                               out_dtype=jnp.float32))
    np.testing.assert_allclose(np.asarray(out_f32),
                               np.asarray(ref_forward(cast_bf16=False)),
                               rtol=1e-5, atol=1e-5)

    print("KERNEL_OK")
</pallas_src>

<mosaic_0001>
module attributes {stable_mosaic.version = 11 : i64} {
  func.func @_proj_kernel(%arg0: i32, %arg1: i32, %arg2: memref<128x128xbf16, #tpu.memory_space<vmem>>, %arg3: memref<128x128xbf16, #tpu.memory_space<vmem>>, %arg4: memref<1x128xf32, #tpu.memory_space<vmem>>, %arg5: memref<128x128xbf16, #tpu.memory_space<vmem>>) attributes {dimension_semantics = [#tpu.dimension_semantics<parallel>, #tpu.dimension_semantics<parallel>], iteration_bounds = array<i64: 2, 1>, scalar_prefetch = 0 : i64, scratch_operands = 0 : i64, tpu.core_type = #tpu.core_type<tc>, window_params = [{transform_indices = @transform_0, window_bounds = array<i64: 128, 128>}, {transform_indices = @transform_1, window_bounds = array<i64: 128, 128>}, {transform_indices = @transform_2, window_bounds = array<i64: 1, 128>}, {transform_indices = @transform_3, window_bounds = array<i64: 128, 128>}]} {
    %c0 = arith.constant 0 : index
    %c0_0 = arith.constant 0 : index
    %0 = vector.load %arg2[%c0, %c0_0] : memref<128x128xbf16, #tpu.memory_space<vmem>>, vector<128x128xbf16>
    %c0_1 = arith.constant 0 : index
    %c0_2 = arith.constant 0 : index
    %1 = vector.load %arg3[%c0_1, %c0_2] : memref<128x128xbf16, #tpu.memory_space<vmem>>, vector<128x128xbf16>
    %cst = arith.constant dense<0.000000e+00> : vector<128x128xf32>
    %2 = tpu.matmul %0, %1, %cst {dimension_numbers = #tpu.dot_dimension_numbers<[1], [0], [0], [1], [0, 0, 1, 1], [], []>} : vector<128x128xbf16>, vector<128x128xbf16>, vector<128x128xf32> -> vector<128x128xf32>
    %c0_3 = arith.constant 0 : index
    %c0_4 = arith.constant 0 : index
    %3 = vector.load %arg4[%c0_3, %c0_4] : memref<1x128xf32, #tpu.memory_space<vmem>>, vector<1x128xf32>
    %4 = vector.broadcast %3 : vector<1x128xf32> to vector<128x128xf32>
    %5 = arith.addf %2, %4 : vector<128x128xf32>
    %6 = arith.truncf %5 : vector<128x128xf32> to vector<128x128xbf16>
    %c0_5 = arith.constant 0 : index
    %c0_6 = arith.constant 0 : index
    %7 = vector.load %arg5[%c0_5, %c0_6] : memref<128x128xbf16, #tpu.memory_space<vmem>>, vector<128x128xbf16>
    tpu.vector_store %arg5[%c0_5, %c0_6], %6 {strides = array<i32>} : memref<128x128xbf16, #tpu.memory_space<vmem>>, vector<128x128xbf16>,
    return
  }
  func.func @transform_0(%arg0: i32, %arg1: i32) -> (i32, i32) {
    %c0_i32 = arith.constant 0 : i32
    %c0_i32_0 = arith.constant 0 : i32
    return %arg0, %c0_i32 : i32, i32
  }
  func.func @transform_1(%arg0: i32, %arg1: i32) -> (i32, i32) {
    %c0_i32 = arith.constant 0 : i32
    %c0_i32_0 = arith.constant 0 : i32
    return %c0_i32, %arg1 : i32, i32
  }
  func.func @transform_2(%arg0: i32, %arg1: i32) -> (i32, i32) {
    %c0_i32 = arith.constant 0 : i32
    %c0_i32_0 = arith.constant 0 : i32
    return %c0_i32, %arg1 : i32, i32
  }
  func.func @transform_3(%arg0: i32, %arg1: i32) -> (i32, i32) {
    %c0_i32 = arith.constant 0 : i32
    return %arg0, %arg1 : i32, i32
  }
}

</mosaic_0001>

<llo_original>
// kernel: tpu_custom_call.1
$region0: #{tpu_custom_call.1}
  #allocation0 [shape = 'u32[]', space=smem, size = 0x4, offset = 0x4, fixed_abs, tag = 'smem constant byte address 0x4 - core index']
  #allocation1 [shape = 'u32[72,128]{1,0:T(1,128)}', space=vmem, size = 0x9000, scoped, tag = 'internal scratch']
  %s0 = inlined_call_operand.hbm [shape: bf16[160,128], index: 0, kind: input, shape index: {}]
  %s1 = inlined_call_operand.hbm [shape: bf16[128,128], index: 1, kind: input, shape index: {}]
  %s2 = inlined_call_operand.vmem [shape: f32[1,128], index: 2, kind: input, shape index: {}]
  %s3 = inlined_call_operand.hbm [shape: bf16[160,128], index: 3, kind: output, shape index: {}]
  %s4 = sld [smem:[#allocation0]]
  $region53: #{tpu_custom_call.1} parent=0
    _
  %s6 = ssub.s32 1, %s4
  %s7 = scalar_select 0, %s6, %s4
  $region1: #{tpu_custom_call.1} parent=0
    #allocation2 [shape = 'u8[65536]{0}', space=vmem, size = 0x10000, scoped, tag = 'input window, operand 0']
    #allocation3 [shape = 's32[2]{0}', space=sflag, size = 0x8, scoped, tag = 'scoped memory for tpu_custom_call.1']
    #allocation4 [shape = 's32[2]{0}', space=sflag, size = 0x8, scoped, tag = 'scoped memory for tpu_custom_call.1']
    #allocation5 [shape = 'u8[32768]{0}', space=vmem, size = 0x8000, scoped, tag = 'input window, operand 1, single buffered']
    #allocation6 [shape = 's32[1]{0}', space=sflag, size = 0x4, scoped, tag = 'scoped memory for tpu_custom_call.1']
    #allocation7 [shape = 'u8[65536]{0}', space=vmem, size = 0x10000, scoped, tag = 'output window, operand 0']
    %8 = vsyncpa [#allocation3], 0
    %s9 = scalar_lea.sflag [#allocation3], 1
    %10 = vsyncpa %s9, 0
    %11 = vsyncpa [#allocation6], 0
    %12 = vsyncpa [#allocation4], 0
    %s13 = scalar_lea.sflag [#allocation4], 1
    %14 = vsyncpa %s13, 0
    loop: start=0, step=1, limit=4
    $region2: #{tpu_custom_call.1} parent=1 // loop_pre_header
      _
    $region3: #{tpu_custom_call.1} parent=1 // loop_header
      %s16 = sphi 0, %s20
      %p17 = scmp.ge.s32.totalorder %s16, 4
      %s23 = sphi 0, %s35
      %s24 = sphi 0, %s31
      %s25 = sphi 0, %s23
      %s26 = sphi 0, %s24
      %s27 = sphi 0, %s25
      %s28 = sphi 0, %s26
      %s38 = sphi 0, %s40
      %s41 = sphi 0, %s38
      %s42 = sphi 0, %s41
      %s58 = sphi 0, %s42
      %s64 = sphi 0, %s66
      %s67 = sphi 0, %s64
      %s68 = sphi 0, %s67
      %s84 = sphi 0, %s68
      %s90 = sphi 0, %s92
      %s93 = sphi 0, %s90
      %s94 = sphi 0, %s93
      %s110 = sphi 0, %s94
      %s118 = sphi 0, %s120
      %s121 = sphi 0, %s118
      %s122 = sphi 0, %s121
      %s138 = sphi 0, %s122
    $region4: #{tpu_custom_call.1} parent=1 // loop_header_branch
      %19 = sbr.rel (%p17) target = $region8
    $region5: #{tpu_custom_call.1} parent=1 // loop_body
      %s21 = ssub.s32 %s16, 1
      %s22 = ssub.s32 %s16, 2
      %s29 = sadd.s32 1, %s24
      %p30 = scmp.ge.s32.totalorder %s29, 1
      %s31 = scalar_select %p30, 0, %s29
      %s32 = sadd.s32 1, %s23
      %s33 = scalar_select %p30, %s32, %s23
      %p34 = scmp.ge.s32.totalorder %s33, 2
      %s35 = scalar_select %p34, 0, %s33
      %s36 = ssub.s32 %s23, %s35
      %p37 = scmp.eq.s32.totalorder %s36, 0
      %s39 = sadd.s32 %s38, 1
      %s40 = scalar_select %p37, %s38, %s39
      %p43 = pneg %p37
      %p44 = scmp.eq.s32.totalorder %s16, 1
      %p45 = por %p43, %p44
      %p46 = scmp.ne.s32.totalorder %s38, %s41
      %p47 = scmp.eq.s32.totalorder %s16, 0
      %p48 = por %p46, %p47
      %p49 = scmp.ne.s32.totalorder %s38, %s41
      %p50 = scmp.eq.s32.totalorder %s21, 1
      %p51 = por %p49, %p50
      %p52 = scmp.ne.s32.totalorder %s41, %s42
      %p53 = scmp.eq.s32.totalorder %s21, 0
      %p54 = por %p52, %p53
      %p55 = scmp.ne.s32.totalorder %s41, %s42
      %p56 = scmp.eq.s32.totalorder %s22, 1
      %p57 = por %p55, %p56
      %p59 = scmp.ne.s32.totalorder %s42, %s58
      %p60 = scmp.eq.s32.totalorder %s22, 0
      %p61 = por %p59, %p60
      %s62 = ssub.s32 %s24, %s31
      %p63 = scmp.eq.s32.totalorder %s62, 0
      %s65 = sadd.s32 %s64, 1
      %s66 = scalar_select %p63, %s64, %s65
      %p69 = pneg %p63
      %p70 = scmp.eq.s32.totalorder %s16, 1
      %p71 = por %p69, %p70
      %p72 = scmp.ne.s32.totalorder %s64, %s67
      %p73 = scmp.eq.s32.totalorder %s16, 0
      %p74 = por %p72, %p73
      %p75 = scmp.ne.s32.totalorder %s64, %s67
      %p76 = scmp.eq.s32.totalorder %s21, 1
      %p77 = por %p75, %p76
      %p78 = scmp.ne.s32.totalorder %s67, %s68
      %p79 = scmp.eq.s32.totalorder %s21, 0
      %p80 = por %p78, %p79
      %p81 = scmp.ne.s32.totalorder %s67, %s68
      %p82 = scmp.eq.s32.totalorder %s22, 1
      %p83 = por %p81, %p82
      %p85 = scmp.ne.s32.totalorder %s68, %s84
      %p86 = scmp.eq.s32.totalorder %s22, 0
      %p87 = por %p85, %p86
      %s88 = ssub.s32 %s24, %s31
      %p89 = scmp.eq.s32.totalorder %s88, 0
      %s91 = sadd.s32 %s90, 1
      %s92 = scalar_select %p89, %s90, %s91
      %p95 = pneg %p89
      %p96 = scmp.eq.s32.totalorder %s16, 1
      %p97 = por %p95, %p96
      %p98 = scmp.ne.s32.totalorder %s90, %s93
      %p99 = scmp.eq.s32.totalorder %s16, 0
      %p100 = por %p98, %p99
      %p101 = scmp.ne.s32.totalorder %s90, %s93
      %p102 = scmp.eq.s32.totalorder %s21, 1
      %p103 = por %p101, %p102
      %p104 = scmp.ne.s32.totalorder %s93, %s94
      %p105 = scmp.eq.s32.totalorder %s21, 0
      %p106 = por %p104, %p105
      %p107 = scmp.ne.s32.totalorder %s93, %s94
      %p108 = scmp.eq.s32.totalorder %s22, 1
      %p109 = por %p107, %p108
      %p111 = scmp.ne.s32.totalorder %s94, %s110
      %p112 = scmp.eq.s32.totalorder %s22, 0
      %p113 = por %p111, %p112
      %s114 = ssub.s32 %s23, %s35
      %s115 = ssub.s32 %s24, %s31
      %s116 = sor.u32 %s114, %s115
      %p117 = scmp.eq.s32.totalorder %s116, 0
      %s119 = sadd.s32 %s118, 1
      %s120 = scalar_select %p117, %s118, %s119
      %p123 = pneg %p117
      %p124 = scmp.eq.s32.totalorder %s16, 1
      %p125 = por %p123, %p124
      %p126 = scmp.ne.s32.totalorder %s118, %s121
      %p127 = scmp.eq.s32.totalorder %s16, 0
      %p128 = por %p126, %p127
      %p129 = scmp.ne.s32.totalorder %s118, %s121
      %p130 = scmp.eq.s32.totalorder %s21, 1
      %p131 = por %p129, %p130
      %p132 = scmp.ne.s32.totalorder %s121, %s122
      %p133 = scmp.eq.s32.totalorder %s21, 0
      %p134 = por %p132, %p133
      %p135 = scmp.ne.s32.totalorder %s121, %s122
      %p136 = scmp.eq.s32.totalorder %s22, 1
      %p137 = por %p135, %p136
      %p139 = scmp.ne.s32.totalorder %s122, %s138
      %p140 = scmp.eq.s32.totalorder %s22, 0
      %p141 = por %p139, %p140
      %p142 = scmp.le.s32.totalorder 1, %s16
      %p143 = scmp.lt.s32.totalorder %s16, 3
      %p144 = pnand %p142, %p143
      %p145 = pneg %p144
      // Predicated region
      $region9: #{tpu_custom_call.1} parent=5 // pred_check
        _
      $region10: #{tpu_custom_call.1} parent=5 // pred_check_branch
        %147 = sbr.rel (%p144) target = $region12
      $region11: #{tpu_custom_call.1} parent=5 // pred_region
        %s148 = ssub.s32 %s16, 1
        // Predicated region
        $region13: #{tpu_custom_call.1} parent=11 // pred_check
          %p149 = pneg %p80
        $region14: #{tpu_custom_call.1} parent=11 // pred_check_branch
          %151 = sbr.rel (%p149) target = $region16
        $region15: #{tpu_custom_call.1} parent=11 // pred_region
          %153 = vsyncadd [#allocation6], 0
          %s154 = smul.addr %s26, 4
          %s155 = scalar_lea.hbm %s1, %s154
          %s156 = sshll.u32 %s155, 4
          %s157 = int_to_ptr.hbm [resolvable:$true] %s156
          %s158 = sshll.u32 [#allocation5], 4
          %s159 = int_to_ptr.vmem [resolvable:$true] %s158
          %164 = dma.hbm_to_vmem [thread:$0]  %s157, 1024, %s159, [#allocation6], 64, 64, 4
        $region16: #{tpu_custom_call.1} parent=11 // pred_fallthru
          _
        // Predicated region
        $region17: #{tpu_custom_call.1} parent=11 // pred_check
          %p165 = pneg %p106
        $region18: #{tpu_custom_call.1} parent=11 // pred_check_branch
          %167 = sbr.rel (%p165) target = $region20
        $region19: #{tpu_custom_call.1} parent=11 // pred_region
          %p168 = scmp.lt.s32.totalorder %s26, 0
          %s169 = scalar_select %p168, %s26, 0
          %s170 = scalar_lea.vmem %s2, %s169
        $region20: #{tpu_custom_call.1} parent=11 // pred_fallthru
          _
      $region12: #{tpu_custom_call.1} parent=5 // pred_fallthru
        _
      %p171 = scmp.lt.s32.totalorder %s16, 2
      // Predicated region
      $region21: #{tpu_custom_call.1} parent=5 // pred_check
        %p172 = pneg %p171
      $region22: #{tpu_custom_call.1} parent=5 // pred_check_branch
        %174 = sbr.rel (%p172) target = $region24
      $region23: #{tpu_custom_call.1} parent=5 // pred_region
        // Predicated region
        $region25: #{tpu_custom_call.1} parent=23 // pred_check
          %p175 = pneg %p48
        $region26: #{tpu_custom_call.1} parent=23 // pred_check_branch
          %177 = sbr.rel (%p175) target = $region28
        $region27: #{tpu_custom_call.1} parent=23 // pred_region
          %s178 = sand.u32 %s38, 1
          %s179 = scalar_lea.sflag [#allocation3], %s178
          %s180 = sand.u32 %s38, 1
          %s181 = smul.addr %s180, 64
          %s182 = scalar_lea.vmem [#allocation2], %s181
          %s183 = smul.u32 16, %s23
          %s184 = ssub.s32 20, %s183
          %p185 = scmp.lt.s32.totalorder %s184, 16
          %s186 = scalar_select %p185, %s184, 16
          %s187 = smul.u32 4, %s186
          %s188 = ssub.s32 64, %s187
          %s189 = sshll.u32 %s188, 4
          %190 = vsyncadd %s179, %s189
          %p191 = scmp.ne.s32.totalorder 0, %s187
          %s192 = smul.addr %s183, 4
          %s193 = scalar_lea.hbm %s0, %s192
          %s194 = smul.u32 4, %s186
          %s195 = sshll.u32 %s193, 4
          %s196 = int_to_ptr.hbm [resolvable:$true] %s195
          %s197 = sshll.u32 %s182, 4
          %s198 = int_to_ptr.vmem [resolvable:$true] %s197
          %s199 = sshll.u32 %s194, 4
          %203 = dma.hbm_to_vmem [thread:$0]  (%p191), %s196, %s199, %s198, %s179, 64, 64, 4
        $region28: #{tpu_custom_call.1} parent=23 // pred_fallthru
          _
      $region24: #{tpu_custom_call.1} parent=5 // pred_fallthru
        _
      %p204 = scmp.le.s32.totalorder 1, %s16
      %p205 = scmp.lt.s32.totalorder %s16, 3
      %p206 = pnand %p204, %p205
      %p207 = pneg %p206
      // Predicated region
      $region29: #{tpu_custom_call.1} parent=5 // pred_check
        _
      $region30: #{tpu_custom_call.1} parent=5 // pred_check_branch
        %209 = sbr.rel (%p206) target = $region32
      $region31: #{tpu_custom_call.1} parent=5 // pred_region
        %s210 = ssub.s32 %s16, 1
        %s211 = sand.u32 %s41, 1
        %s212 = scalar_lea.sflag [#allocation3], %s211
        %s213 = sand.u32 %s41, 1
        %s214 = smul.addr %s213, 64
        %s215 = scalar_lea.vmem [#allocation2], %s214
        // Predicated region
        $region33: #{tpu_custom_call.1} parent=31 // pred_check
          %p216 = pneg %p54
        $region34: #{tpu_custom_call.1} parent=31 // pred_check_branch
          %218 = sbr.rel (%p216) target = $region36
        $region35: #{tpu_custom_call.1} parent=31 // pred_region
          %220 = dma.done %s212, 1024
        $region36: #{tpu_custom_call.1} parent=31 // pred_fallthru
          _
        // Predicated region
        $region37: #{tpu_custom_call.1} parent=31 // pred_check
          %p221 = pneg %p80
        $region38: #{tpu_custom_call.1} parent=31 // pred_check_branch
          %223 = sbr.rel (%p221) target = $region40
        $region39: #{tpu_custom_call.1} parent=31 // pred_region
          %225 = dma.done [#allocation6], 1024
        $region40: #{tpu_custom_call.1} parent=31 // pred_fallthru
          _
        %s226 = sand.u32 %s41, 1
        %s227 = scalar_lea.sflag [#allocation3], %s226
        %s228 = sand.u32 %s41, 1
        %s229 = smul.addr %s228, 64
        %s230 = scalar_lea.vmem [#allocation2], %s229
        %p231 = pneg %p54
        %p232 = pneg %p51
        %p233 = pneg %p80
        %p234 = pneg %p77
        %p235 = scmp.lt.s32.totalorder %s26, 0
        %s236 = scalar_select %p235, %s26, 0
        %s237 = scalar_lea.vmem %s2, %s236
        %p238 = pneg %p106
        %p239 = pneg %p103
        %p240 = pneg %p134
        %p241 = pneg %p131
        %s242 = sand.u32 %s121, 1
        %s243 = scalar_lea.sflag [#allocation4], %s242
        %s244 = sand.u32 %s121, 1
        %s245 = smul.addr %s244, 64
        %s246 = scalar_lea.vmem [#allocation7], %s245
        %s247 = smul.u32 16, %s25
        %s248 = ssub.s32 20, %s247
        %p249 = scmp.lt.s32.totalorder %s248, 16
        %s250 = scalar_select %p249, %s248, 16
        %s251 = smul.u32 4, %s250
        %p252 = scmp.lt.s32.totalorder %s26, 0
        %s253 = scalar_select %p252, %s26, 0
        %s254 = scalar_lea.vmem %s2, %s253
        %s255 = smul.u32 16, %s25
        %s256 = ssub.s32 20, %s255
        %p257 = scmp.lt.s32.totalorder %s256, 16
        %s258 = scalar_select %p257, %s256, 16
        %s259 = smul.u32 4, %s258
        %v260 = vld [vmem:[%s215] sm:$0xf]
        %v261 = vld [vmem:[%s215 + $0x4] sm:$0xf]
        %v262 = vld [vmem:[%s215 + $0x8] sm:$0xf]
        %v263 = vld [vmem:[%s215 + $0xc] sm:$0xf]
        %v264 = vld [vmem:[%s215 + $0x10] sm:$0xf]
        %v265 = vld [vmem:[%s215 + $0x14] sm:$0xf]
        %v266 = vld [vmem:[%s215 + $0x18] sm:$0xf]
        %v267 = vld [vmem:[%s215 + $0x1c] sm:$0xf]
        %v268 = vld [vmem:[%s215 + $0x20] sm:$0xf]
        %v269 = vld [vmem:[%s215 + $0x24] sm:$0xf]
        %v270 = vld [vmem:[%s215 + $0x28] sm:$0xf]
        %v271 = vld [vmem:[%s215 + $0x2c] sm:$0xf]
        %v272 = vld [vmem:[%s215 + $0x30] sm:$0xf]
        %v273 = vld [vmem:[%s215 + $0x34] sm:$0xf]
        %v274 = vld [vmem:[%s215 + $0x38] sm:$0xf]
        %v275 = vld [vmem:[%s215 + $0x3c] sm:$0xf]
        %v276 = vld [vmem:[#allocation5] sm:$0xf]
        %v277 = vld [vmem:[#allocation5 + $0x4] sm:$0xf]
        %v278 = vld [vmem:[#allocation5 + $0x8] sm:$0xf]
        %v279 = vld [vmem:[#allocation5 + $0xc] sm:$0xf]
        %v280 = vld [vmem:[#allocation5 + $0x10] sm:$0xf]
        %v281 = vld [vmem:[#allocation5 + $0x14] sm:$0xf]
        %v282 = vld [vmem:[#allocation5 + $0x18] sm:$0xf]
        %v283 = vld [vmem:[#allocation5 + $0x1c] sm:$0xf]
        %v284 = vld [vmem:[#allocation5 + $0x20] sm:$0xf]
        %v285 = vld [vmem:[#allocation5 + $0x24] sm:$0xf]
        %v286 = vld [vmem:[#allocation5 + $0x28] sm:$0xf]
        %v287 = vld [vmem:[#allocation5 + $0x2c] sm:$0xf]
        %v288 = vld [vmem:[#allocation5 + $0x30] sm:$0xf]
        %v289 = vld [vmem:[#allocation5 + $0x34] sm:$0xf]
        %v290 = vld [vmem:[#allocation5 + $0x38] sm:$0xf]
        %v291 = vld [vmem:[#allocation5 + $0x3c] sm:$0xf]
        %v292 = vld [vmem:[%s254] sm:$0x1]
        %v294 = vperm.slane %v292, 0
        %v312 = vunpack.c.l.b16 %v260
        %v313 = vunpack.c.l.b16 %v261
        %v314 = vunpack.c.l.b16 %v262
        %v315 = vunpack.c.l.b16 %v263
        %v316 = vunpack.c.l.b16 %v264
        %v317 = vunpack.c.l.b16 %v265
        %v318 = vunpack.c.l.b16 %v266
        %v319 = vunpack.c.l.b16 %v267
        %v320 = vunpack.c.l.b16 %v268
        %v321 = vunpack.c.l.b16 %v269
        %v322 = vunpack.c.l.b16 %v270
        %v323 = vunpack.c.l.b16 %v271
        %v324 = vunpack.c.l.b16 %v272
        %v325 = vunpack.c.l.b16 %v273
        %v326 = vunpack.c.l.b16 %v274
        %v327 = vunpack.c.l.b16 %v275
        %v328 = vpack.c.b16 %v313, %v312
        %v329 = vpack.c.b16 %v315, %v314
        %v330 = vpack.c.b16 %v317, %v316
        %v331 = vpack.c.b16 %v319, %v318
        %v332 = vpack.c.b16 %v321, %v320
        %v333 = vpack.c.b16 %v323, %v322
        %v334 = vpack.c.b16 %v325, %v324
        %v335 = vpack.c.b16 %v327, %v326
        %v360 = vunpack.c.l.b16 %v276
        %v361 = vunpack.c.l.b16 %v277
        %v362 = vunpack.c.l.b16 %v278
        %v363 = vunpack.c.l.b16 %v279
        %v364 = vunpack.c.l.b16 %v280
        %v365 = vunpack.c.l.b16 %v281
        %v366 = vunpack.c.l.b16 %v282
        %v367 = vunpack.c.l.b16 %v283
        %v368 = vunpack.c.l.b16 %v284
        %v369 = vunpack.c.l.b16 %v285
        %v370 = vunpack.c.l.b16 %v286
        %v371 = vunpack.c.l.b16 %v287
        %v372 = vunpack.c.l.b16 %v288
        %v373 = vunpack.c.l.b16 %v289
        %v374 = vunpack.c.l.b16 %v290
        %v375 = vunpack.c.l.b16 %v291
        %v376 = vpack.c.b16 %v361, %v360
        %v377 = vpack.c.b16 %v363, %v362
        %v378 = vpack.c.b16 %v365, %v364
        %v379 = vpack.c.b16 %v367, %v366
        %v380 = vpack.c.b16 %v369, %v368
        %v381 = vpack.c.b16 %v371, %v370
        %v382 = vpack.c.b16 %v373, %v372
        %v383 = vpack.c.b16 %v375, %v374
        %392 = vmatpush.bf16.msra.mxu0 %v383
        %393 = vmatpush.bf16.msra.mxu0 %v382
        %394 = vmatpush.bf16.msra.mxu0 %v381
        %395 = vmatpush.bf16.msra.mxu0 %v380
        %396 = vmatpush.bf16.msra.mxu0 %v379
        %397 = vmatpush.bf16.msra.mxu0 %v378
        %398 = vmatpush.bf16.msra.mxu0 %v377
        %399 = vmatpush.bf16.msra.mxu0 %v376
        %400 = vmatmul.bf16.gmra.mxu0 %v328
        %v401 = vpop.f32.mrf.mxu0
        %v402 = vadd.f32 %v294, %v401
        %v403 = vpop.f32.mrf.mxu0
        %v404 = vadd.f32 %v294, %v403
        %405 = vmatmul.bf16.gmra.mxu0 %v329
        %v406 = vpop.f32.mrf.mxu0
        %v407 = vadd.f32 %v294, %v406
        %v408 = vpop.f32.mrf.mxu0
        %v409 = vadd.f32 %v294, %v408
        %410 = vmatmul.bf16.gmra.mxu0 %v330
        %v411 = vpop.f32.mrf.mxu0
        %v412 = vadd.f32 %v294, %v411
        %v413 = vpop.f32.mrf.mxu0
        %v414 = vadd.f32 %v294, %v413
        %415 = vmatmul.bf16.gmra.mxu0 %v331
        %v416 = vpop.f32.mrf.mxu0
        %v417 = vadd.f32 %v294, %v416
        %v418 = vpop.f32.mrf.mxu0
        %v419 = vadd.f32 %v294, %v418
        %420 = vmatmul.bf16.gmra.mxu0 %v332
        %v421 = vpop.f32.mrf.mxu0
        %v422 = vadd.f32 %v294, %v421
        %v423 = vpop.f32.mrf.mxu0
        %v424 = vadd.f32 %v294, %v423
        %425 = vmatmul.bf16.gmra.mxu0 %v333
        %v426 = vpop.f32.mrf.mxu0
        %v427 = vadd.f32 %v294, %v426
        %v428 = vpop.f32.mrf.mxu0
        %v429 = vadd.f32 %v294, %v428
        %430 = vmatmul.bf16.gmra.mxu0 %v334
        %v431 = vpop.f32.mrf.mxu0
        %v432 = vadd.f32 %v294, %v431
        %v433 = vpop.f32.mrf.mxu0
        %v434 = vadd.f32 %v294, %v433
        %435 = vmatmul.bf16.gmra.mxu0 %v335
        %v436 = vpop.f32.mrf.mxu0
        %v437 = vadd.f32 %v294, %v436
        %v438 = vpop.f32.mrf.mxu0
        %v439 = vadd.f32 %v294, %v438
        %440 = vdwg.mxu0
        %v441 = vpack.c.bf16 %v402, %v402
        %v442 = vpack.c.bf16 %v404, %v404
        %v443 = vpack.c.bf16 %v407, %v407
        %v444 = vpack.c.bf16 %v409, %v409
        %v445 = vpack.c.bf16 %v412, %v412
        %v446 = vpack.c.bf16 %v414, %v414
        %v447 = vpack.c.bf16 %v417, %v417
        %v448 = vpack.c.bf16 %v419, %v419
        %v449 = vpack.c.bf16 %v422, %v422
        %v450 = vpack.c.bf16 %v424, %v424
        %v451 = vpack.c.bf16 %v427, %v427
        %v452 = vpack.c.bf16 %v429, %v429
        %v453 = vpack.c.bf16 %v432, %v432
        %v454 = vpack.c.bf16 %v434, %v434
        %v455 = vpack.c.bf16 %v437, %v437
        %v456 = vpack.c.bf16 %v439, %v439
        %457 = vst [vmem:[%s246] sm:$0xf] %v441
        %458 = vst [vmem:[%s246 + $0x4] sm:$0xf] %v442
        %459 = vst [vmem:[%s246 + $0x8] sm:$0xf] %v443
        %460 = vst [vmem:[%s246 + $0xc] sm:$0xf] %v444
        %461 = vst [vmem:[%s246 + $0x10] sm:$0xf] %v445
        %462 = vst [vmem:[%s246 + $0x14] sm:$0xf] %v446
        %463 = vst [vmem:[%s246 + $0x18] sm:$0xf] %v447
        %464 = vst [vmem:[%s246 + $0x1c] sm:$0xf] %v448
        %465 = vst [vmem:[%s246 + $0x20] sm:$0xf] %v449
        %466 = vst [vmem:[%s246 + $0x24] sm:$0xf] %v450
        %467 = vst [vmem:[%s246 + $0x28] sm:$0xf] %v451
        %468 = vst [vmem:[%s246 + $0x2c] sm:$0xf] %v452
        %469 = vst [vmem:[%s246 + $0x30] sm:$0xf] %v453
        %470 = vst [vmem:[%s246 + $0x34] sm:$0xf] %v454
        %471 = vst [vmem:[%s246 + $0x38] sm:$0xf] %v455
        %472 = vst [vmem:[%s246 + $0x3c] sm:$0xf] %v456
        %s473 = sand.u32 %s121, 1
        %s474 = scalar_lea.sflag [#allocation4], %s473
        %s475 = sand.u32 %s121, 1
        %s476 = smul.addr %s475, 64
        %s477 = scalar_lea.vmem [#allocation7], %s476
        // Predicated region
        $region41: #{tpu_custom_call.1} parent=31 // pred_check
          %p478 = pneg %p131
        $region42: #{tpu_custom_call.1} parent=31 // pred_check_branch
          %480 = sbr.rel (%p478) target = $region44
        $region43: #{tpu_custom_call.1} parent=31 // pred_region
          %s481 = smul.u32 16, %s25
          %s482 = ssub.s32 20, %s481
          %p483 = scmp.lt.s32.totalorder %s482, 16
          %s484 = scalar_select %p483, %s482, 16
          %s485 = smul.u32 4, %s484
          %s486 = ssub.s32 64, %s485
          %s487 = sshll.u32 %s486, 4
          %488 = vsyncadd %s474, %s487
          %p489 = scmp.ne.s32.totalorder 0, %s485
          %s490 = sadd.s32 %s26, %s481
          %s491 = smul.addr %s490, 4
          %s492 = scalar_lea.hbm %s3, %s491
          %s493 = smul.u32 4, %s484
          %s494 = sshll.u32 %s477, 4
          %s495 = int_to_ptr.vmem [resolvable:$true] %s494
          %s496 = sshll.u32 %s492, 4
          %s497 = int_to_ptr.hbm [resolvable:$true] %s496
          %s498 = sshll.u32 %s493, 4
          %502 = dma.vmem_to_hbm [thread:$0]  (%p489), %s495, %s498, %s497, %s474, 64, 64, 4
        $region44: #{tpu_custom_call.1} parent=31 // pred_fallthru
          _
      $region32: #{tpu_custom_call.1} parent=5 // pred_fallthru
        _
      %p503 = scmp.le.s32.totalorder 2, %s16
      // Predicated region
      $region45: #{tpu_custom_call.1} parent=5 // pred_check
        %p504 = pneg %p503
      $region46: #{tpu_custom_call.1} parent=5 // pred_check_branch
        %506 = sbr.rel (%p504) target = $region48
      $region47: #{tpu_custom_call.1} parent=5 // pred_region
        %s507 = ssub.s32 %s16, 2
        // Predicated region
        $region49: #{tpu_custom_call.1} parent=47 // pred_check
          %p508 = pneg %p137
        $region50: #{tpu_custom_call.1} parent=47 // pred_check_branch
          %510 = sbr.rel (%p508) target = $region52
        $region51: #{tpu_custom_call.1} parent=47 // pred_region
          %s511 = sand.u32 %s122, 1
          %s512 = scalar_lea.sflag [#allocation4], %s511
          %s513 = sand.u32 %s122, 1
          %s514 = smul.addr %s513, 64
          %s515 = scalar_lea.vmem [#allocation7], %s514
          %517 = dma.done %s512, 1024
        $region52: #{tpu_custom_call.1} parent=47 // pred_fallthru
          _
      $region48: #{tpu_custom_call.1} parent=5 // pred_fallthru
        _
    $region6: #{tpu_custom_call.1} parent=1 // loop_footer
      %s20 = sadd.s32 1, %s16
    $region7: #{tpu_custom_call.1} parent=1 // loop_footer_branch
      %15 = sbr.rel target = $region3
    $region8: #{tpu_custom_call.1} parent=1 // loop_exit
      _
    %518 = vsyncpa [#allocation3], 1
    %s519 = scalar_lea.sflag [#allocation3], 1
    %520 = vsyncpa %s519, 1
    %521 = vsyncpa [#allocation6], 1
    %522 = vsyncpa [#allocation4], 1
    %s523 = scalar_lea.sflag [#allocation4], 1
    %524 = vsyncpa %s523, 1

</llo_original>
